<compile_context>
chip_gen: v7x
topology: tpu7x:2x2x1
jax: 0.10.0
libtpu: 0.0.40
codegen_flags: <defaults>
</compile_context>

<pallas_src>
import functools
import math

import jax
import jax.numpy as jnp
from jax import lax
from jax.experimental import pallas as pl
from jax.experimental.pallas import tpu as pltpu

LANES = 128
SUBLANES = 8
DEFAULT_TILE_ROWS = 8192        # (8192, 128) f32 block = 4 MiB per input
CHUNK_ROWS = 1024               # in-kernel reduction chunk (~0.5 MiB f32)
VMEM_LIMIT_BYTES = 32 * 1024 * 1024


def _block_sse_slab(x_ref, y_ref, *, rows, chunk_rows, masked, row_offset,
                    valid_rows):
    """(rows, 128) block -> (8, 128) slab of squared-error partial sums.

    The block is processed in chunk_rows-row chunks so the largest
    intermediate is ~chunk_rows*128*4 bytes regardless of the tile size.  When
    `masked`, rows whose global index >= valid_rows (Pallas padding of a
    ragged trailing block) contribute zero.
    """
    n_chunks = rows // chunk_rows

    def body(c, acc):
        start = pl.multiple_of(c * chunk_rows, chunk_rows)
        xs = x_ref[pl.ds(start, chunk_rows), :].astype(jnp.float32)
        ys = y_ref[pl.ds(start, chunk_rows), :].astype(jnp.float32)
        d = xs - ys
        d2 = d * d
        if masked:
            row = lax.broadcasted_iota(jnp.int32, (chunk_rows, LANES), 0)
            global_row = row + (row_offset + c * chunk_rows)
            d2 = jnp.where(global_row < valid_rows, d2, jnp.float32(0.0))
        # (chunk, 128) -> (chunk//8, 8, 128) matches the native (8, 128) vreg
        # tiling; the axis-0 sum is plain vreg adds on the VPU.
        part = jnp.sum(d2.reshape(chunk_rows // SUBLANES, SUBLANES, LANES), axis=0)
        return acc + part

    return lax.fori_loop(0, n_chunks, body,
                         jnp.zeros((SUBLANES, LANES), jnp.float32))


def _psnr_single_block_kernel(x_ref, y_ref, o_ref, *, n_elems, finalize):
    """Whole (rows, 128) slab in one block (rows <= DEFAULT_TILE_ROWS)."""
    d = x_ref[...].astype(jnp.float32) - y_ref[...].astype(jnp.float32)
    sse = jnp.sum(d * d)
    if finalize:
        # 20 * log10(1 / sqrt(mse)) == -10 * log10(mse)
        o_ref[0, 0] = jnp.float32(-10.0) * jnp.log10(sse / jnp.float32(n_elems))
    else:
        o_ref[0, 0] = sse


def _psnr_partial_kernel(x_ref, y_ref, o_ref, *, tile_rows, chunk_rows,
                         valid_rows, ragged):
    """v7x variant: each (tile_rows, 128) block writes its own (8, 128) partial
    output block (independent grid steps -> "parallel" axis, both TCs can
    stream)."""
    def slab(masked, row_offset):
        return _block_sse_slab(x_ref, y_ref, rows=tile_rows,
                               chunk_rows=chunk_rows, masked=masked,
                               row_offset=row_offset, valid_rows=valid_rows)

    if ragged:
        i = pl.program_id(0)
        last = pl.num_programs(0) - 1

        @pl.when(i == last)
        def _():
            o_ref[...] = slab(True, i * tile_rows)

        @pl.when(i != last)
        def _():
            o_ref[...] = slab(False, 0)
    else:
        o_ref[...] = slab(False, 0)


def _psnr_acc_kernel(x_ref, y_ref, o_ref, acc_ref, *, tile_rows, chunk_rows,
                     valid_rows, n_elems, ragged, finalize):
    """Single-TensorCore variant: (8,128) VMEM accumulator across a sequential
    grid, finalized into a (1,1) SMEM scalar at the last step (no separate XLA
    reduce launch in the wrapper)."""
    i = pl.program_id(0)
    last = pl.num_programs(0) - 1

    @pl.when(i == 0)
    def _():
        acc_ref[...] = jnp.zeros_like(acc_ref)

    def slab(masked, row_offset):
        return _block_sse_slab(x_ref, y_ref, rows=tile_rows,
                               chunk_rows=chunk_rows, masked=masked,
                               row_offset=row_offset, valid_rows=valid_rows)

    if ragged:
        @pl.when(i == last)
        def _():
            acc_ref[...] += slab(True, i * tile_rows)

        @pl.when(i != last)
        def _():
            acc_ref[...] += slab(False, 0)
    else:
        acc_ref[...] += slab(False, 0)

    @pl.when(i == last)
    def _():
        sse = jnp.sum(acc_ref[...])
        if finalize:
            o_ref[0, 0] = jnp.float32(-10.0) * jnp.log10(sse / jnp.float32(n_elems))
        else:
            o_ref[0, 0] = sse


def _tiled_variant():
    """Per-block partial outputs on v7x (2 TCs); in-kernel accumulator
    elsewhere (saves the wrapper reduce launch on 1-TC v5e/v6e)."""
    try:
        kind = str(jax.devices()[0].device_kind).lower()
    except Exception:
        return "accumulate"
    return "partials" if ("v7" in kind or "7x" in kind) else "accumulate"


def psnr_pallas(x, y, *, tile_rows=DEFAULT_TILE_ROWS, variant=None):
    """PSNR over all elements of x and y (any shape; accumulation in f32)."""
    assert x.shape == y.shape, "x and y must have the same shape"
    assert tile_rows % CHUNK_ROWS == 0 and CHUNK_ROWS % 32 == 0

    n_elems = math.prod([int(s) for s in x.shape])
    xf = x.reshape(-1)
    yf = y.reshape(-1)

    rows = n_elems // LANES
    rem = n_elems - rows * LANES

    if rows == 0:
        # Fewer than 128 elements: a kernel launch is pure overhead.
        d = xf.astype(jnp.float32) - yf.astype(jnp.float32)
        return jnp.float32(-10.0) * jnp.log10(jnp.sum(d * d) / jnp.float32(n_elems))

    if rem:
        # Rare ragged-lane case: kernel consumes the 128-aligned prefix; the
        # <128-element tail is folded into the final sum here (no full
        # jnp.pad copies of x and y).
        dt = (xf[rows * LANES:].astype(jnp.float32)
              - yf[rows * LANES:].astype(jnp.float32))
        tail_sse = jnp.sum(dt * dt)
        xf = xf[: rows * LANES]
        yf = yf[: rows * LANES]
    else:
        tail_sse = None
    finalize = tail_sse is None

    x2 = xf.reshape(rows, LANES)
    y2 = yf.reshape(rows, LANES)

    cost = pl.CostEstimate(
        flops=3 * n_elems,
        transcendentals=0,
        bytes_accessed=n_elems * (x.dtype.itemsize + y.dtype.itemsize) + 4,
    )

    if rows <= tile_rows:
        # Single-block fast path: one launch, scalar SMEM output, PSNR (or the
        # raw squared-error sum when a lane tail exists) computed in-kernel.
        out = pl.pallas_call(
            functools.partial(_psnr_single_block_kernel,
                              n_elems=n_elems, finalize=finalize),
            out_shape=jax.ShapeDtypeStruct((1, 1), jnp.float32),
            grid_spec=pltpu.PrefetchScalarGridSpec(
                num_scalar_prefetch=0,
                grid=(1,),
                in_specs=[
                    pl.BlockSpec((rows, LANES), lambda i: (0, 0)),
                    pl.BlockSpec((rows, LANES), lambda i: (0, 0)),
                ],
                out_specs=pl.BlockSpec(memory_space=pltpu.SMEM),
            ),
            compiler_params=pltpu.CompilerParams(
                dimension_semantics=("arbitrary",),
                vmem_limit_bytes=VMEM_LIMIT_BYTES,
            ),
            cost_estimate=cost,
        )(x2, y2)
        if finalize:
            return out[0, 0]
        mse = (out[0, 0] + tail_sse) / jnp.float32(n_elems)
        return jnp.float32(-10.0) * jnp.log10(mse)

    # Tiled path: (tile_rows, 128) ~4 MiB f32 blocks, ragged last block masked
    # in-kernel (mask gated to the last grid step only).
    n_blocks = pl.cdiv(rows, tile_rows)
    ragged = (rows % tile_rows) != 0
    if variant is None:
        variant = _tiled_variant()

    if variant == "partials":
        # v7x: independent per-block (8,128) partials on a "parallel" grid so
        # both TensorCores can split the HBM stream; tiny wrapper reduce.
        partials = pl.pallas_call(
            functools.partial(_psnr_partial_kernel, tile_rows=tile_rows,
                              chunk_rows=CHUNK_ROWS, valid_rows=rows,
                              ragged=ragged),
            out_shape=jax.ShapeDtypeStruct((n_blocks * SUBLANES, LANES),
                                           jnp.float32),
            grid_spec=pltpu.PrefetchScalarGridSpec(
                num_scalar_prefetch=0,
                grid=(n_blocks,),
                in_specs=[
                    pl.BlockSpec((tile_rows, LANES), lambda i: (i, 0)),
                    pl.BlockSpec((tile_rows, LANES), lambda i: (i, 0)),
                ],
                out_specs=pl.BlockSpec((SUBLANES, LANES), lambda i: (i, 0)),
            ),
            compiler_params=pltpu.CompilerParams(
                dimension_semantics=("parallel",),
                vmem_limit_bytes=VMEM_LIMIT_BYTES,
            ),
            cost_estimate=cost,
        )(x2, y2)
        sse = jnp.sum(partials)
        if tail_sse is not None:
            sse = sse + tail_sse
        return jnp.float32(-10.0) * jnp.log10(sse / jnp.float32(n_elems))

    # Single-TC chips (v5e/v6e): sequential grid with an in-kernel accumulator;
    # -10*log10(mse) lands directly in a (1,1) SMEM output.
    out = pl.pallas_call(
        functools.partial(_psnr_acc_kernel, tile_rows=tile_rows,
                          chunk_rows=CHUNK_ROWS, valid_rows=rows,
                          n_elems=n_elems, ragged=ragged, finalize=finalize),
        out_shape=jax.ShapeDtypeStruct((1, 1), jnp.float32),
        grid_spec=pltpu.PrefetchScalarGridSpec(
            num_scalar_prefetch=0,
            grid=(n_blocks,),
            in_specs=[
                pl.BlockSpec((tile_rows, LANES), lambda i: (i, 0)),
                pl.BlockSpec((tile_rows, LANES), lambda i: (i, 0)),
            ],
            out_specs=pl.BlockSpec(memory_space=pltpu.SMEM),
            scratch_shapes=[pltpu.VMEM((SUBLANES, LANES), jnp.float32)],
        ),
        compiler_params=pltpu.CompilerParams(
            dimension_semantics=("arbitrary",),
            vmem_limit_bytes=VMEM_LIMIT_BYTES,
        ),
        cost_estimate=cost,
    )(x2, y2)
    if finalize:
        return out[0, 0]
    mse = (out[0, 0] + tail_sse) / jnp.float32(n_elems)
    return jnp.float32(-10.0) * jnp.log10(mse)


def psnr_ref(x, y):
    mse = jnp.mean((x.astype(jnp.float32) - y.astype(jnp.float32)) ** 2)
    return 20.0 * jnp.log10(1.0 / jnp.sqrt(mse))


if __name__ == "__main__":
    key = jax.random.PRNGKey(0)
    kx, ky, k2, k3 = jax.random.split(key, 4)

    # Primary small test (NCHW): exercises the single-block fast path.
    x = jax.random.uniform(kx, (2, 4, 16, 16), dtype=jnp.float32)
    y = jnp.clip(x + 0.05 * jax.random.normal(ky, (2, 4, 16, 16), jnp.float32),
                 0.0, 1.0)
    out = psnr_pallas(x, y)
    jax.block_until_ready(out)
    ref = psnr_ref(x, y)
    assert jnp.allclose(out, ref, rtol=1e-5, atol=1e-5), (out, ref)

    # Tiled path, both variants (accumulator for 1-TC chips, per-block
    # partials for v7x): rows = 30720 -> 4 blocks of 8192, ragged last block.
    kx2, ky2 = jax.random.split(k2)
    x2 = jax.random.uniform(kx2, (4, 3, 512, 640), dtype=jnp.float32)
    y2 = jnp.clip(x2 + 0.1 * jax.random.normal(ky2, (4, 3, 512, 640), jnp.float32),
                  0.0, 1.0)
    ref2 = psnr_ref(x2, y2)
    for v in ("accumulate", "partials"):
        out2 = psnr_pallas(x2, y2, variant=v)
        jax.block_until_ready(out2)
        assert jnp.allclose(out2, ref2, rtol=1e-4, atol=1e-4), (v, out2, ref2)

    # Ragged lane count (numel % 128 != 0): kernel prefix + wrapper tail fold.
    kx3, ky3 = jax.random.split(k3)
    x3 = jax.random.uniform(kx3, (2, 3, 37, 41), dtype=jnp.float32)
    y3 = jnp.clip(x3 + 0.05 * jax.random.normal(ky3, (2, 3, 37, 41), jnp.float32),
                  0.0, 1.0)
    out3 = psnr_pallas(x3, y3)
    jax.block_until_ready(out3)
    ref3 = psnr_ref(x3, y3)
    assert jnp.allclose(out3, ref3, rtol=1e-5, atol=1e-5), (out3, ref3)

    print("KERNEL_OK")
</pallas_src>

<mosaic_0001>
module attributes {stable_mosaic.version = 11 : i64} {
  func.func @_psnr_single_block_kernel(%arg0: i32, %arg1: memref<16x128xf32, #tpu.memory_space<vmem>>, %arg2: memref<16x128xf32, #tpu.memory_space<vmem>>, %arg3: memref<1x1xf32, #tpu.memory_space<smem>>) attributes {dimension_semantics = [#tpu.dimension_semantics<arbitrary>], iteration_bounds = array<i64: 1>, scalar_prefetch = 0 : i64, scratch_operands = 0 : i64, tpu.core_type = #tpu.core_type<tc>, window_params = [{pipeline_mode = #tpu.pipeline_mode<synchronous>, transform_indices = @transform_0, window_bounds = array<i64: 16, 128>}, {pipeline_mode = #tpu.pipeline_mode<synchronous>, transform_indices = @transform_1, window_bounds = array<i64: 16, 128>}, {transform_indices = @transform_2, window_bounds = array<i64: 1, 1>}]} {
    %c0 = arith.constant 0 : index
    %c0_0 = arith.constant 0 : index
    %0 = vector.load %arg1[%c0, %c0_0] : memref<16x128xf32, #tpu.memory_space<vmem>>, vector<16x128xf32>
    %c0_1 = arith.constant 0 : index
    %c0_2 = arith.constant 0 : index
    %1 = vector.load %arg2[%c0_1, %c0_2] : memref<16x128xf32, #tpu.memory_space<vmem>>, vector<16x128xf32>
    %2 = arith.subf %0, %1 : vector<16x128xf32>
    %3 = arith.mulf %2, %2 : vector<16x128xf32>
    %4 = vector.shape_cast %3 : vector<16x128xf32> to vector<1x16x128xf32>
    %cst = arith.constant dense<0.000000e+00> : vector<1xf32>
    %5 = vector.multi_reduction <add>, %4, %cst [1, 2] : vector<1x16x128xf32> to vector<1xf32>
    %6 = vector.shape_cast %5 : vector<1xf32> to vector<1x1x1xf32>
    %7 = vector.extract %6[0, 0, 0] : f32 from vector<1x1x1xf32>
    %cst_3 = arith.constant 2.048000e+03 : f32
    %8 = arith.divf %7, %cst_3 : f32
    %9 = math.log %8 : f32
    %cst_4 = arith.constant 0.434294492 : f32
    %10 = arith.mulf %9, %cst_4 : f32
    %cst_5 = arith.constant -1.000000e+01 : f32
    %11 = arith.mulf %cst_5, %10 : f32
    %c0_6 = arith.constant 0 : index
    %c0_7 = arith.constant 0 : index
    %12 = memref.load %arg3[%c0_6, %c0_7] : memref<1x1xf32, #tpu.memory_space<smem>>
    memref.store %11, %arg3[%c0_6, %c0_7] : memref<1x1xf32, #tpu.memory_space<smem>>
    return
  }
  func.func @transform_0(%arg0: i32) -> (i32, i32) {
    %c0_i32 = arith.constant 0 : i32
    %c0_i32_0 = arith.constant 0 : i32
    %c0_i32_1 = arith.constant 0 : i32
    return %c0_i32, %c0_i32_0 : i32, i32
  }
  func.func @transform_1(%arg0: i32) -> (i32, i32) {
    %c0_i32 = arith.constant 0 : i32
    %c0_i32_0 = arith.constant 0 : i32
    %c0_i32_1 = arith.constant 0 : i32
    return %c0_i32, %c0_i32_0 : i32, i32
  }
  func.func @transform_2(%arg0: i32) -> (i32, i32) {
    %c0_i32 = arith.constant 0 : i32
    %c0_i32_0 = arith.constant 0 : i32
    %c0_i32_1 = arith.constant 0 : i32
    return %c0_i32, %c0_i32_0 : i32, i32
  }
}

</mosaic_0001>

<llo_original>
// kernel: tpu_custom_call.1
$region0: #{tpu_custom_call.1}
  #allocation0 [shape = 'u32[]', space=smem, size = 0x4, offset = 0x4, fixed_abs, tag = 'smem constant byte address 0x4 - core index']
  #allocation1 [shape = 'u32[144,128]{1,0:T(1,128)}', space=vmem, size = 0x12000, scoped, tag = 'internal scratch']
  %s0 = inlined_call_operand.hbm [shape: f32[16,128], index: 0, kind: input, shape index: {}]
  %s1 = inlined_call_operand.hbm [shape: f32[16,128], index: 1, kind: input, shape index: {}]
  %s2 = inlined_call_operand.hbm [shape: f32[1,1], index: 2, kind: output, shape index: {}]
  %s3 = sld [smem:[#allocation0]]
  $region26: #{tpu_custom_call.1} parent=0
    _
  %s5 = ssub.s32 1, %s3
  %s6 = scalar_select 0, %s5, %s3
  $region1: #{tpu_custom_call.1} parent=0
    #allocation2 [shape = 'u8[8192]{0}', space=vmem, size = 0x2000, scoped, tag = 'input window, operand 0, single buffered']
    #allocation3 [shape = 's32[1]{0}', space=sflag, size = 0x4, scoped, tag = 'scoped memory for tpu_custom_call.1']
    #allocation4 [shape = 's32[1]{0}', space=sflag, size = 0x4, scoped, tag = 'scoped memory for tpu_custom_call.1']
    #allocation5 [shape = 'u8[8192]{0}', space=vmem, size = 0x2000, scoped, tag = 'input window, operand 1, single buffered']
    #allocation6 [shape = 's32[1]{0}', space=sflag, size = 0x4, scoped, tag = 'scoped memory for tpu_custom_call.1']
    #allocation7 [shape = 'u8[512]{0}', space=smem, size = 0x200, scoped, tag = 'output window, operand 0, single buffered']
    %7 = vsyncpa [#allocation3], 0
    %8 = vsyncpa [#allocation6], 0
    %9 = vsyncpa [#allocation4], 0
    // Predicated region
    $region2: #{tpu_custom_call.1} parent=1 // pred_check
      _
    $region3: #{tpu_custom_call.1} parent=1 // pred_check_branch
      %11 = sbr.rel (0) target = $region5
    $region4: #{tpu_custom_call.1} parent=1 // pred_region
      %s13 = ssub.s32 256, 256
      %14 = vsyncadd [#allocation3], %s13
      %s15 = sshll.u32 [#allocation2], 4
      %s16 = int_to_ptr.vmem [resolvable:$true] %s15
      %21 = dma.hbm_to_vmem [thread:$0]  %s0, 256, %s16, [#allocation3], 128, 128, 8
    $region5: #{tpu_custom_call.1} parent=1 // pred_fallthru
      _
    // Predicated region
    $region6: #{tpu_custom_call.1} parent=1 // pred_check
      _
    $region7: #{tpu_custom_call.1} parent=1 // pred_check_branch
      %23 = sbr.rel (0) target = $region9
    $region8: #{tpu_custom_call.1} parent=1 // pred_region
      %s25 = ssub.s32 256, 256
      %26 = vsyncadd [#allocation6], %s25
      %s27 = sshll.u32 [#allocation5], 4
      %s28 = int_to_ptr.vmem [resolvable:$true] %s27
      %33 = dma.hbm_to_vmem [thread:$0]  %s1, 256, %s28, [#allocation6], 128, 128, 8
    $region9: #{tpu_custom_call.1} parent=1 // pred_fallthru
      _
    // Predicated region
    $region10: #{tpu_custom_call.1} parent=1 // pred_check
      _
    $region11: #{tpu_custom_call.1} parent=1 // pred_check_branch
      %35 = sbr.rel (0) target = $region13
    $region12: #{tpu_custom_call.1} parent=1 // pred_region
      %36 = dma.done [#allocation3], 256
    $region13: #{tpu_custom_call.1} parent=1 // pred_fallthru
      _
    // Predicated region
    $region14: #{tpu_custom_call.1} parent=1 // pred_check
      _
    $region15: #{tpu_custom_call.1} parent=1 // pred_check_branch
      %38 = sbr.rel (0) target = $region17
    $region16: #{tpu_custom_call.1} parent=1 // pred_region
      %39 = dma.done [#allocation6], 256
    $region17: #{tpu_custom_call.1} parent=1 // pred_fallthru
      _
    %v40 = vld [vmem:[#allocation2] sm:$0xff]
    %v41 = vld [vmem:[#allocation2 + $0x8] sm:$0xff]
    %v42 = vld [vmem:[#allocation5] sm:$0xff]
    %v43 = vld [vmem:[#allocation5 + $0x8] sm:$0xff]
    %v44 = vsub.f32 %v40, %v42
    %v45 = vsub.f32 %v41, %v43
    %v46 = vmul.f32 %v44, %v44
    %v47 = vmul.f32 %v45, %v45
    %v48 = vadd.f32 %v46, %v47
    %49 = vadd.xlane.f32.xlu0 %v48
    %v50 = vpop.xlane.xlu0 %49
    %v51 = vrot.slane %v50, 4
    %v52 = vadd.f32 %v50, %v51
    %v53 = vrot.slane %v52, 2
    %v54 = vadd.f32 %v52, %v53
    %v55 = vrot.slane %v54, 1
    %v56 = vadd.f32 %v54, %v55
    %s57 = vtos %v56
    %v58 = vrcp.pop 2048.0
    %s59 = vtos %v58
    %s60 = smul.f32 %s57, %s59
    %v61 = vstv %s60
    %v62 = vlog2.pop %v61
    %v63 = vmul.f32 %v62, 0.6931472
    %s64 = vtos %v63
    %s65 = smul.f32 %s64, 0.4342945
    %s66 = smul.f32 %s65, -10.0
    %s67 = scalar_lea.smem [#allocation7], 0
    %68 = sst [smem:[%s67]] %s66
    // Predicated region
    $region18: #{tpu_custom_call.1} parent=1 // pred_check
      _
    $region19: #{tpu_custom_call.1} parent=1 // pred_check_branch
      %70 = sbr.rel (0) target = $region21
    $region20: #{tpu_custom_call.1} parent=1 // pred_region
      %s72 = ssub.s32 16, 16
      %73 = vsyncadd [#allocation4], %s72
      %76 = dma.smem_to_hbm [#allocation7], 16, %s2, [#allocation4]
    $region21: #{tpu_custom_call.1} parent=1 // pred_fallthru
      _
    // Predicated region
    $region22: #{tpu_custom_call.1} parent=1 // pred_check
      _
    $region23: #{tpu_custom_call.1} parent=1 // pred_check_branch
      %78 = sbr.rel (0) target = $region25
    $region24: #{tpu_custom_call.1} parent=1 // pred_region
      %79 = dma.done [#allocation4], 16
    $region25: #{tpu_custom_call.1} parent=1 // pred_fallthru
      _
    %80 = sfence
    %81 = vsyncpa [#allocation3], 1
    %82 = vsyncpa [#allocation6], 1
    %83 = vsyncpa [#allocation4], 1

</llo_original>
